<compile_context>
chip_gen: v6e
topology: v6e:2x2x1
jax: 0.10.0
libtpu: 0.0.40
codegen_flags: <defaults>
</compile_context>

<pallas_src>
import jax
import jax.numpy as jnp
from jax.experimental import pallas as pl
from jax.experimental.pallas import tpu as pltpu

_IN = 2
_HIDDEN = 10
_OUT = 3

# Flat f32 parameter vector layout (padded to 64 scalars -> 256 B of SMEM):
#   [ 0:20)  w1 (2, 10) row-major  -> element (i, j) at  i*10 + j
#   [20:30)  b1 (10,)
#   [30:60)  w2 (10, 3) row-major  -> element (j, n) at  30 + j*3 + n
#   [60:63)  b2 (3,)
_W1_OFF = 0
_B1_OFF = _W1_OFF + _IN * _HIDDEN        # 20
_W2_OFF = _B1_OFF + _HIDDEN              # 30
_B2_OFF = _W2_OFF + _HIDDEN * _OUT       # 60
_PACK_LEN = 64

_SUB = 8                      # sublane depth of the batch view
_DEF_BLOCK_COLS = 8192        # lane extent per grid step (=> 64K rows / step)


def pack_params(w1, b1, w2, b2):
    """w1:(2,10), b1:(10,), w2:(10,3), b2:(3,) -> flat f32 (64,) scalar vector.

    Weights are stored (in_features, out_features) == torch W.T, so that
    x @ w == fc(x).  Pack once per parameter update and reuse across calls.
    """
    flat = jnp.concatenate([
        jnp.asarray(w1, jnp.float32).reshape(-1),
        jnp.asarray(b1, jnp.float32).reshape(-1),
        jnp.asarray(w2, jnp.float32).reshape(-1),
        jnp.asarray(b2, jnp.float32).reshape(-1),
    ])
    return jnp.pad(flat, (0, _PACK_LEN - flat.shape[0]))


def _net_kernel(p_ref, x_ref, o_ref):
    # p_ref: SMEM (64,) f32 scalar parameters
    # x_ref: VMEM (2, 8, tl)   -- batch on sublanes x lanes, dense vregs
    # o_ref: VMEM (3, 8, tl)
    x0 = x_ref[0, :, :]                      # (8, tl) dense
    x1 = x_ref[1, :, :]

    # fc2 accumulators, initialized with the bias (scalar -> vreg splat).
    acc = [jnp.full(x0.shape, p_ref[_B2_OFF + n], dtype=jnp.float32)
           for n in range(_OUT)]

    # Statically unrolled hidden units: each h_j is one dense (8, tl) plane.
    # Pure VPU scalar*vector MACs + one EUP sigmoid per unit; no XLU work.
    for j in range(_HIDDEN):
        h = jax.nn.sigmoid(p_ref[_B1_OFF + j]
                           + p_ref[_W1_OFF + j] * x0
                           + p_ref[_W1_OFF + _HIDDEN + j] * x1)
        for n in range(_OUT):
            acc[n] = acc[n] + p_ref[_W2_OFF + j * _OUT + n] * h

    for n in range(_OUT):
        o_ref[n, :, :] = acc[n]              # full-width lane-dense stores


def net_forward_packed(params_flat, x, *, block_cols=_DEF_BLOCK_COLS):
    """params_flat: (64,) f32 from pack_params(); x: (B, 2) f32 -> (B, 3) f32."""
    B = x.shape[0]
    pad = (-B) % _SUB                        # <= 7 rows of sublane padding
    Bp = B + pad
    cols = Bp // _SUB

    # Layout plumbing (fuses under jit): batch -> sublanes x lanes.
    x_cm = jnp.transpose(x.astype(jnp.float32))          # (2, B)
    if pad:
        x_cm = jnp.pad(x_cm, ((0, 0), (0, pad)))
    x_cm = x_cm.reshape(_IN, _SUB, cols)

    block_cols = max(128, (int(block_cols) // 128) * 128)
    if cols <= 2 * 128:
        tl, grid_l = cols, 1                 # single block == full array extent
    else:
        # >= 2 grid steps (v7x megacore) with large, 128-aligned lane tiles;
        # the partial last block is masked by Pallas (no padding pass).
        half = pl.cdiv(cols, 2)
        tl = min(block_cols, pl.cdiv(half, 128) * 128)
        grid_l = pl.cdiv(cols, tl)

    out_cm = pl.pallas_call(
        _net_kernel,
        out_shape=jax.ShapeDtypeStruct((_OUT, _SUB, cols), jnp.float32),
        grid=(grid_l,),
        in_specs=[
            # 63 parameters as SMEM scalars: one tiny copy, read on the
            # scalar slot, resident for the whole grid.
            pl.BlockSpec(memory_space=pltpu.MemorySpace.SMEM),
            # Batch lane-tiles of the channel-major x view.
            pl.BlockSpec((_IN, _SUB, tl), lambda i: (0, 0, i)),
        ],
        out_specs=pl.BlockSpec((_OUT, _SUB, tl), lambda i: (0, 0, i)),
        compiler_params=pltpu.CompilerParams(
            dimension_semantics=("parallel",)),
    )(params_flat, x_cm)

    out = jnp.transpose(out_cm.reshape(_OUT, Bp))        # (Bp, 3)
    return out[:B] if pad else out


def net_forward(x, w1, b1, w2, b2):
    """Convenience wrapper: packs params per call (prefer pack_params once)."""
    return net_forward_packed(pack_params(w1, b1, w2, b2), x)


def net_reference(x, w1, b1, w2, b2):
    h = jax.nn.sigmoid(x.astype(jnp.float32) @ w1 + b1)
    return h @ w2 + b2


if __name__ == "__main__":
    key = jax.random.PRNGKey(0)
    k_x, k_w1, k_b1, k_w2, k_b2 = jax.random.split(key, 5)

    B = 8
    x = jax.random.normal(k_x, (B, _IN), dtype=jnp.float32)

    # PyTorch-style init (uniform +/- 1/sqrt(fan_in)); weights stored (in, out).
    bnd1 = 1.0 / jnp.sqrt(2.0)
    bnd2 = 1.0 / jnp.sqrt(10.0)
    w1 = jax.random.uniform(k_w1, (_IN, _HIDDEN), jnp.float32, -bnd1, bnd1)
    b1 = jax.random.uniform(k_b1, (_HIDDEN,), jnp.float32, -bnd1, bnd1)
    w2 = jax.random.uniform(k_w2, (_HIDDEN, _OUT), jnp.float32, -bnd2, bnd2)
    b2 = jax.random.uniform(k_b2, (_OUT,), jnp.float32, -bnd2, bnd2)

    params = pack_params(w1, b1, w2, b2)
    fwd = jax.jit(net_forward_packed, static_argnames=("block_cols",))

    # Small batch (single tiny block).
    out = fwd(params, x)
    jax.block_until_ready(out)
    ref = net_reference(x, w1, b1, w2, b2)
    assert out.shape == (B, _OUT)
    assert jnp.allclose(out, ref, atol=1e-5, rtol=1e-5), "mismatch (B=8)"

    # Non-multiple-of-8 batch: exercises the small sublane-pad path.
    B2 = 1037
    x2 = jax.random.normal(jax.random.PRNGKey(1), (B2, _IN), dtype=jnp.float32)
    out2 = fwd(params, x2)
    jax.block_until_ready(out2)
    ref2 = net_reference(x2, w1, b1, w2, b2)
    assert out2.shape == (B2, _OUT)
    assert jnp.allclose(out2, ref2, atol=1e-5, rtol=1e-5), "mismatch (B=1037)"

    # Larger batch: exercises the gridded path (>=2 "parallel" steps and a
    # partial last lane-block masked by Pallas, with no batch-padding pass).
    B3 = 5000
    x3 = jax.random.normal(jax.random.PRNGKey(2), (B3, _IN), dtype=jnp.float32)
    out3 = fwd(params, x3)
    jax.block_until_ready(out3)
    ref3 = net_reference(x3, w1, b1, w2, b2)
    assert out3.shape == (B3, _OUT)
    assert jnp.allclose(out3, ref3, atol=1e-5, rtol=1e-5), "mismatch (B=5000)"

    print("KERNEL_OK")
</pallas_src>

<mosaic_0001>
module attributes {stable_mosaic.version = 11 : i64} {
  func.func @_net_kernel(%arg0: i32, %arg1: memref<64xf32, #tpu.memory_space<smem>>, %arg2: memref<2x8x1xf32, #tpu.memory_space<vmem>>, %arg3: memref<3x8x1xf32, #tpu.memory_space<vmem>>) attributes {dimension_semantics = [#tpu.dimension_semantics<parallel>], iteration_bounds = array<i64: 1>, scalar_prefetch = 0 : i64, scratch_operands = 0 : i64, tpu.core_type = #tpu.core_type<tc>, window_params = [{transform_indices = @transform_0, window_bounds = array<i64: 64>}, {transform_indices = @transform_1, window_bounds = array<i64: 2, 8, 1>}, {transform_indices = @transform_2, window_bounds = array<i64: 3, 8, 1>}]} {
    %c0 = arith.constant 0 : index
    %c0_0 = arith.constant 0 : index
    %c0_1 = arith.constant 0 : index
    %0 = vector.load %arg2[%c0, %c0_0, %c0_1] : memref<2x8x1xf32, #tpu.memory_space<vmem>>, vector<1x8x1xf32>
    %1 = vector.shape_cast %0 : vector<1x8x1xf32> to vector<8x1xf32>
    %c1 = arith.constant 1 : index
    %c0_2 = arith.constant 0 : index
    %c0_3 = arith.constant 0 : index
    %2 = vector.load %arg2[%c1, %c0_2, %c0_3] : memref<2x8x1xf32, #tpu.memory_space<vmem>>, vector<1x8x1xf32>
    %3 = vector.shape_cast %2 : vector<1x8x1xf32> to vector<8x1xf32>
    %c60 = arith.constant 60 : index
    %4 = memref.load %arg1[%c60] : memref<64xf32, #tpu.memory_space<smem>>
    %5 = vector.broadcast %4 : f32 to vector<8x1xf32>
    %c61 = arith.constant 61 : index
    %6 = memref.load %arg1[%c61] : memref<64xf32, #tpu.memory_space<smem>>
    %7 = vector.broadcast %6 : f32 to vector<8x1xf32>
    %c62 = arith.constant 62 : index
    %8 = memref.load %arg1[%c62] : memref<64xf32, #tpu.memory_space<smem>>
    %9 = vector.broadcast %8 : f32 to vector<8x1xf32>
    %c20 = arith.constant 20 : index
    %10 = memref.load %arg1[%c20] : memref<64xf32, #tpu.memory_space<smem>>
    %c0_4 = arith.constant 0 : index
    %11 = memref.load %arg1[%c0_4] : memref<64xf32, #tpu.memory_space<smem>>
    %12 = vector.broadcast %11 : f32 to vector<8x1xf32>
    %13 = arith.mulf %12, %1 : vector<8x1xf32>
    %14 = vector.broadcast %10 : f32 to vector<8x1xf32>
    %15 = arith.addf %14, %13 : vector<8x1xf32>
    %c10 = arith.constant 10 : index
    %16 = memref.load %arg1[%c10] : memref<64xf32, #tpu.memory_space<smem>>
    %17 = vector.broadcast %16 : f32 to vector<8x1xf32>
    %18 = arith.mulf %17, %3 : vector<8x1xf32>
    %19 = arith.addf %15, %18 : vector<8x1xf32>
    %20 = arith.negf %19 : vector<8x1xf32>
    %21 = math.exp %20 : vector<8x1xf32>
    %cst = arith.constant 1.000000e+00 : f32
    %22 = vector.broadcast %cst : f32 to vector<8x1xf32>
    %23 = arith.addf %22, %21 : vector<8x1xf32>
    %24 = arith.divf %22, %23 : vector<8x1xf32>
    %c30 = arith.constant 30 : index
    %25 = memref.load %arg1[%c30] : memref<64xf32, #tpu.memory_space<smem>>
    %26 = vector.broadcast %25 : f32 to vector<8x1xf32>
    %27 = arith.mulf %26, %24 : vector<8x1xf32>
    %28 = arith.addf %5, %27 : vector<8x1xf32>
    %c31 = arith.constant 31 : index
    %29 = memref.load %arg1[%c31] : memref<64xf32, #tpu.memory_space<smem>>
    %30 = vector.broadcast %29 : f32 to vector<8x1xf32>
    %31 = arith.mulf %30, %24 : vector<8x1xf32>
    %32 = arith.addf %7, %31 : vector<8x1xf32>
    %c32 = arith.constant 32 : index
    %33 = memref.load %arg1[%c32] : memref<64xf32, #tpu.memory_space<smem>>
    %34 = vector.broadcast %33 : f32 to vector<8x1xf32>
    %35 = arith.mulf %34, %24 : vector<8x1xf32>
    %36 = arith.addf %9, %35 : vector<8x1xf32>
    %c21 = arith.constant 21 : index
    %37 = memref.load %arg1[%c21] : memref<64xf32, #tpu.memory_space<smem>>
    %c1_5 = arith.constant 1 : index
    %38 = memref.load %arg1[%c1_5] : memref<64xf32, #tpu.memory_space<smem>>
    %39 = vector.broadcast %38 : f32 to vector<8x1xf32>
    %40 = arith.mulf %39, %1 : vector<8x1xf32>
    %41 = vector.broadcast %37 : f32 to vector<8x1xf32>
    %42 = arith.addf %41, %40 : vector<8x1xf32>
    %c11 = arith.constant 11 : index
    %43 = memref.load %arg1[%c11] : memref<64xf32, #tpu.memory_space<smem>>
    %44 = vector.broadcast %43 : f32 to vector<8x1xf32>
    %45 = arith.mulf %44, %3 : vector<8x1xf32>
    %46 = arith.addf %42, %45 : vector<8x1xf32>
    %47 = arith.negf %46 : vector<8x1xf32>
    %48 = math.exp %47 : vector<8x1xf32>
    %cst_6 = arith.constant 1.000000e+00 : f32
    %49 = vector.broadcast %cst_6 : f32 to vector<8x1xf32>
    %50 = arith.addf %49, %48 : vector<8x1xf32>
    %51 = arith.divf %49, %50 : vector<8x1xf32>
    %c33 = arith.constant 33 : index
    %52 = memref.load %arg1[%c33] : memref<64xf32, #tpu.memory_space<smem>>
    %53 = vector.broadcast %52 : f32 to vector<8x1xf32>
    %54 = arith.mulf %53, %51 : vector<8x1xf32>
    %55 = arith.addf %28, %54 : vector<8x1xf32>
    %c34 = arith.constant 34 : index
    %56 = memref.load %arg1[%c34] : memref<64xf32, #tpu.memory_space<smem>>
    %57 = vector.broadcast %56 : f32 to vector<8x1xf32>
    %58 = arith.mulf %57, %51 : vector<8x1xf32>
    %59 = arith.addf %32, %58 : vector<8x1xf32>
    %c35 = arith.constant 35 : index
    %60 = memref.load %arg1[%c35] : memref<64xf32, #tpu.memory_space<smem>>
    %61 = vector.broadcast %60 : f32 to vector<8x1xf32>
    %62 = arith.mulf %61, %51 : vector<8x1xf32>
    %63 = arith.addf %36, %62 : vector<8x1xf32>
    %c22 = arith.constant 22 : index
    %64 = memref.load %arg1[%c22] : memref<64xf32, #tpu.memory_space<smem>>
    %c2 = arith.constant 2 : index
    %65 = memref.load %arg1[%c2] : memref<64xf32, #tpu.memory_space<smem>>
    %66 = vector.broadcast %65 : f32 to vector<8x1xf32>
    %67 = arith.mulf %66, %1 : vector<8x1xf32>
    %68 = vector.broadcast %64 : f32 to vector<8x1xf32>
    %69 = arith.addf %68, %67 : vector<8x1xf32>
    %c12 = arith.constant 12 : index
    %70 = memref.load %arg1[%c12] : memref<64xf32, #tpu.memory_space<smem>>
    %71 = vector.broadcast %70 : f32 to vector<8x1xf32>
    %72 = arith.mulf %71, %3 : vector<8x1xf32>
    %73 = arith.addf %69, %72 : vector<8x1xf32>
    %74 = arith.negf %73 : vector<8x1xf32>
    %75 = math.exp %74 : vector<8x1xf32>
    %cst_7 = arith.constant 1.000000e+00 : f32
    %76 = vector.broadcast %cst_7 : f32 to vector<8x1xf32>
    %77 = arith.addf %76, %75 : vector<8x1xf32>
    %78 = arith.divf %76, %77 : vector<8x1xf32>
    %c36 = arith.constant 36 : index
    %79 = memref.load %arg1[%c36] : memref<64xf32, #tpu.memory_space<smem>>
    %80 = vector.broadcast %79 : f32 to vector<8x1xf32>
    %81 = arith.mulf %80, %78 : vector<8x1xf32>
    %82 = arith.addf %55, %81 : vector<8x1xf32>
    %c37 = arith.constant 37 : index
    %83 = memref.load %arg1[%c37] : memref<64xf32, #tpu.memory_space<smem>>
    %84 = vector.broadcast %83 : f32 to vector<8x1xf32>
    %85 = arith.mulf %84, %78 : vector<8x1xf32>
    %86 = arith.addf %59, %85 : vector<8x1xf32>
    %c38 = arith.constant 38 : index
    %87 = memref.load %arg1[%c38] : memref<64xf32, #tpu.memory_space<smem>>
    %88 = vector.broadcast %87 : f32 to vector<8x1xf32>
    %89 = arith.mulf %88, %78 : vector<8x1xf32>
    %90 = arith.addf %63, %89 : vector<8x1xf32>
    %c23 = arith.constant 23 : index
    %91 = memref.load %arg1[%c23] : memref<64xf32, #tpu.memory_space<smem>>
    %c3 = arith.constant 3 : index
    %92 = memref.load %arg1[%c3] : memref<64xf32, #tpu.memory_space<smem>>
    %93 = vector.broadcast %92 : f32 to vector<8x1xf32>
    %94 = arith.mulf %93, %1 : vector<8x1xf32>
    %95 = vector.broadcast %91 : f32 to vector<8x1xf32>
    %96 = arith.addf %95, %94 : vector<8x1xf32>
    %c13 = arith.constant 13 : index
    %97 = memref.load %arg1[%c13] : memref<64xf32, #tpu.memory_space<smem>>
    %98 = vector.broadcast %97 : f32 to vector<8x1xf32>
    %99 = arith.mulf %98, %3 : vector<8x1xf32>
    %100 = arith.addf %96, %99 : vector<8x1xf32>
    %101 = arith.negf %100 : vector<8x1xf32>
    %102 = math.exp %101 : vector<8x1xf32>
    %cst_8 = arith.constant 1.000000e+00 : f32
    %103 = vector.broadcast %cst_8 : f32 to vector<8x1xf32>
    %104 = arith.addf %103, %102 : vector<8x1xf32>
    %105 = arith.divf %103, %104 : vector<8x1xf32>
    %c39 = arith.constant 39 : index
    %106 = memref.load %arg1[%c39] : memref<64xf32, #tpu.memory_space<smem>>
    %107 = vector.broadcast %106 : f32 to vector<8x1xf32>
    %108 = arith.mulf %107, %105 : vector<8x1xf32>
    %109 = arith.addf %82, %108 : vector<8x1xf32>
    %c40 = arith.constant 40 : index
    %110 = memref.load %arg1[%c40] : memref<64xf32, #tpu.memory_space<smem>>
    %111 = vector.broadcast %110 : f32 to vector<8x1xf32>
    %112 = arith.mulf %111, %105 : vector<8x1xf32>
    %113 = arith.addf %86, %112 : vector<8x1xf32>
    %c41 = arith.constant 41 : index
    %114 = memref.load %arg1[%c41] : memref<64xf32, #tpu.memory_space<smem>>
    %115 = vector.broadcast %114 : f32 to vector<8x1xf32>
    %116 = arith.mulf %115, %105 : vector<8x1xf32>
    %117 = arith.addf %90, %116 : vector<8x1xf32>
    %c24 = arith.constant 24 : index
    %118 = memref.load %arg1[%c24] : memref<64xf32, #tpu.memory_space<smem>>
    %c4 = arith.constant 4 : index
    %119 = memref.load %arg1[%c4] : memref<64xf32, #tpu.memory_space<smem>>
    %120 = vector.broadcast %119 : f32 to vector<8x1xf32>
    %121 = arith.mulf %120, %1 : vector<8x1xf32>
    %122 = vector.broadcast %118 : f32 to vector<8x1xf32>
    %123 = arith.addf %122, %121 : vector<8x1xf32>
    %c14 = arith.constant 14 : index
    %124 = memref.load %arg1[%c14] : memref<64xf32, #tpu.memory_space<smem>>
    %125 = vector.broadcast %124 : f32 to vector<8x1xf32>
    %126 = arith.mulf %125, %3 : vector<8x1xf32>
    %127 = arith.addf %123, %126 : vector<8x1xf32>
    %128 = arith.negf %127 : vector<8x1xf32>
    %129 = math.exp %128 : vector<8x1xf32>
    %cst_9 = arith.constant 1.000000e+00 : f32
    %130 = vector.broadcast %cst_9 : f32 to vector<8x1xf32>
    %131 = arith.addf %130, %129 : vector<8x1xf32>
    %132 = arith.divf %130, %131 : vector<8x1xf32>
    %c42 = arith.constant 42 : index
    %133 = memref.load %arg1[%c42] : memref<64xf32, #tpu.memory_space<smem>>
    %134 = vector.broadcast %133 : f32 to vector<8x1xf32>
    %135 = arith.mulf %134, %132 : vector<8x1xf32>
    %136 = arith.addf %109, %135 : vector<8x1xf32>
    %c43 = arith.constant 43 : index
    %137 = memref.load %arg1[%c43] : memref<64xf32, #tpu.memory_space<smem>>
    %138 = vector.broadcast %137 : f32 to vector<8x1xf32>
    %139 = arith.mulf %138, %132 : vector<8x1xf32>
    %140 = arith.addf %113, %139 : vector<8x1xf32>
    %c44 = arith.constant 44 : index
    %141 = memref.load %arg1[%c44] : memref<64xf32, #tpu.memory_space<smem>>
    %142 = vector.broadcast %141 : f32 to vector<8x1xf32>
    %143 = arith.mulf %142, %132 : vector<8x1xf32>
    %144 = arith.addf %117, %143 : vector<8x1xf32>
    %c25 = arith.constant 25 : index
    %145 = memref.load %arg1[%c25] : memref<64xf32, #tpu.memory_space<smem>>
    %c5 = arith.constant 5 : index
    %146 = memref.load %arg1[%c5] : memref<64xf32, #tpu.memory_space<smem>>
    %147 = vector.broadcast %146 : f32 to vector<8x1xf32>
    %148 = arith.mulf %147, %1 : vector<8x1xf32>
    %149 = vector.broadcast %145 : f32 to vector<8x1xf32>
    %150 = arith.addf %149, %148 : vector<8x1xf32>
    %c15 = arith.constant 15 : index
    %151 = memref.load %arg1[%c15] : memref<64xf32, #tpu.memory_space<smem>>
    %152 = vector.broadcast %151 : f32 to vector<8x1xf32>
    %153 = arith.mulf %152, %3 : vector<8x1xf32>
    %154 = arith.addf %150, %153 : vector<8x1xf32>
    %155 = arith.negf %154 : vector<8x1xf32>
    %156 = math.exp %155 : vector<8x1xf32>
    %cst_10 = arith.constant 1.000000e+00 : f32
    %157 = vector.broadcast %cst_10 : f32 to vector<8x1xf32>
    %158 = arith.addf %157, %156 : vector<8x1xf32>
    %159 = arith.divf %157, %158 : vector<8x1xf32>
    %c45 = arith.constant 45 : index
    %160 = memref.load %arg1[%c45] : memref<64xf32, #tpu.memory_space<smem>>
    %161 = vector.broadcast %160 : f32 to vector<8x1xf32>
    %162 = arith.mulf %161, %159 : vector<8x1xf32>
    %163 = arith.addf %136, %162 : vector<8x1xf32>
    %c46 = arith.constant 46 : index
    %164 = memref.load %arg1[%c46] : memref<64xf32, #tpu.memory_space<smem>>
    %165 = vector.broadcast %164 : f32 to vector<8x1xf32>
    %166 = arith.mulf %165, %159 : vector<8x1xf32>
    %167 = arith.addf %140, %166 : vector<8x1xf32>
    %c47 = arith.constant 47 : index
    %168 = memref.load %arg1[%c47] : memref<64xf32, #tpu.memory_space<smem>>
    %169 = vector.broadcast %168 : f32 to vector<8x1xf32>
    %170 = arith.mulf %169, %159 : vector<8x1xf32>
    %171 = arith.addf %144, %170 : vector<8x1xf32>
    %c26 = arith.constant 26 : index
    %172 = memref.load %arg1[%c26] : memref<64xf32, #tpu.memory_space<smem>>
    %c6 = arith.constant 6 : index
    %173 = memref.load %arg1[%c6] : memref<64xf32, #tpu.memory_space<smem>>
    %174 = vector.broadcast %173 : f32 to vector<8x1xf32>
    %175 = arith.mulf %174, %1 : vector<8x1xf32>
    %176 = vector.broadcast %172 : f32 to vector<8x1xf32>
    %177 = arith.addf %176, %175 : vector<8x1xf32>
    %c16 = arith.constant 16 : index
    %178 = memref.load %arg1[%c16] : memref<64xf32, #tpu.memory_space<smem>>
    %179 = vector.broadcast %178 : f32 to vector<8x1xf32>
    %180 = arith.mulf %179, %3 : vector<8x1xf32>
    %181 = arith.addf %177, %180 : vector<8x1xf32>
    %182 = arith.negf %181 : vector<8x1xf32>
    %183 = math.exp %182 : vector<8x1xf32>
    %cst_11 = arith.constant 1.000000e+00 : f32
    %184 = vector.broadcast %cst_11 : f32 to vector<8x1xf32>
    %185 = arith.addf %184, %183 : vector<8x1xf32>
    %186 = arith.divf %184, %185 : vector<8x1xf32>
    %c48 = arith.constant 48 : index
    %187 = memref.load %arg1[%c48] : memref<64xf32, #tpu.memory_space<smem>>
    %188 = vector.broadcast %187 : f32 to vector<8x1xf32>
    %189 = arith.mulf %188, %186 : vector<8x1xf32>
    %190 = arith.addf %163, %189 : vector<8x1xf32>
    %c49 = arith.constant 49 : index
    %191 = memref.load %arg1[%c49] : memref<64xf32, #tpu.memory_space<smem>>
    %192 = vector.broadcast %191 : f32 to vector<8x1xf32>
    %193 = arith.mulf %192, %186 : vector<8x1xf32>
    %194 = arith.addf %167, %193 : vector<8x1xf32>
    %c50 = arith.constant 50 : index
    %195 = memref.load %arg1[%c50] : memref<64xf32, #tpu.memory_space<smem>>
    %196 = vector.broadcast %195 : f32 to vector<8x1xf32>
    %197 = arith.mulf %196, %186 : vector<8x1xf32>
    %198 = arith.addf %171, %197 : vector<8x1xf32>
    %c27 = arith.constant 27 : index
    %199 = memref.load %arg1[%c27] : memref<64xf32, #tpu.memory_space<smem>>
    %c7 = arith.constant 7 : index
    %200 = memref.load %arg1[%c7] : memref<64xf32, #tpu.memory_space<smem>>
    %201 = vector.broadcast %200 : f32 to vector<8x1xf32>
    %202 = arith.mulf %201, %1 : vector<8x1xf32>
    %203 = vector.broadcast %199 : f32 to vector<8x1xf32>
    %204 = arith.addf %203, %202 : vector<8x1xf32>
    %c17 = arith.constant 17 : index
    %205 = memref.load %arg1[%c17] : memref<64xf32, #tpu.memory_space<smem>>
    %206 = vector.broadcast %205 : f32 to vector<8x1xf32>
    %207 = arith.mulf %206, %3 : vector<8x1xf32>
    %208 = arith.addf %204, %207 : vector<8x1xf32>
    %209 = arith.negf %208 : vector<8x1xf32>
    %210 = math.exp %209 : vector<8x1xf32>
    %cst_12 = arith.constant 1.000000e+00 : f32
    %211 = vector.broadcast %cst_12 : f32 to vector<8x1xf32>
    %212 = arith.addf %211, %210 : vector<8x1xf32>
    %213 = arith.divf %211, %212 : vector<8x1xf32>
    %c51 = arith.constant 51 : index
    %214 = memref.load %arg1[%c51] : memref<64xf32, #tpu.memory_space<smem>>
    %215 = vector.broadcast %214 : f32 to vector<8x1xf32>
    %216 = arith.mulf %215, %213 : vector<8x1xf32>
    %217 = arith.addf %190, %216 : vector<8x1xf32>
    %c52 = arith.constant 52 : index
    %218 = memref.load %arg1[%c52] : memref<64xf32, #tpu.memory_space<smem>>
    %219 = vector.broadcast %218 : f32 to vector<8x1xf32>
    %220 = arith.mulf %219, %213 : vector<8x1xf32>
    %221 = arith.addf %194, %220 : vector<8x1xf32>
    %c53 = arith.constant 53 : index
    %222 = memref.load %arg1[%c53] : memref<64xf32, #tpu.memory_space<smem>>
    %223 = vector.broadcast %222 : f32 to vector<8x1xf32>
    %224 = arith.mulf %223, %213 : vector<8x1xf32>
    %225 = arith.addf %198, %224 : vector<8x1xf32>
    %c28 = arith.constant 28 : index
    %226 = memref.load %arg1[%c28] : memref<64xf32, #tpu.memory_space<smem>>
    %c8 = arith.constant 8 : index
    %227 = memref.load %arg1[%c8] : memref<64xf32, #tpu.memory_space<smem>>
    %228 = vector.broadcast %227 : f32 to vector<8x1xf32>
    %229 = arith.mulf %228, %1 : vector<8x1xf32>
    %230 = vector.broadcast %226 : f32 to vector<8x1xf32>
    %231 = arith.addf %230, %229 : vector<8x1xf32>
    %c18 = arith.constant 18 : index
    %232 = memref.load %arg1[%c18] : memref<64xf32, #tpu.memory_space<smem>>
    %233 = vector.broadcast %232 : f32 to vector<8x1xf32>
    %234 = arith.mulf %233, %3 : vector<8x1xf32>
    %235 = arith.addf %231, %234 : vector<8x1xf32>
    %236 = arith.negf %235 : vector<8x1xf32>
    %237 = math.exp %236 : vector<8x1xf32>
    %cst_13 = arith.constant 1.000000e+00 : f32
    %238 = vector.broadcast %cst_13 : f32 to vector<8x1xf32>
    %239 = arith.addf %238, %237 : vector<8x1xf32>
    %240 = arith.divf %238, %239 : vector<8x1xf32>
    %c54 = arith.constant 54 : index
    %241 = memref.load %arg1[%c54] : memref<64xf32, #tpu.memory_space<smem>>
    %242 = vector.broadcast %241 : f32 to vector<8x1xf32>
    %243 = arith.mulf %242, %240 : vector<8x1xf32>
    %244 = arith.addf %217, %243 : vector<8x1xf32>
    %c55 = arith.constant 55 : index
    %245 = memref.load %arg1[%c55] : memref<64xf32, #tpu.memory_space<smem>>
    %246 = vector.broadcast %245 : f32 to vector<8x1xf32>
    %247 = arith.mulf %246, %240 : vector<8x1xf32>
    %248 = arith.addf %221, %247 : vector<8x1xf32>
    %c56 = arith.constant 56 : index
    %249 = memref.load %arg1[%c56] : memref<64xf32, #tpu.memory_space<smem>>
    %250 = vector.broadcast %249 : f32 to vector<8x1xf32>
    %251 = arith.mulf %250, %240 : vector<8x1xf32>
    %252 = arith.addf %225, %251 : vector<8x1xf32>
    %c29 = arith.constant 29 : index
    %253 = memref.load %arg1[%c29] : memref<64xf32, #tpu.memory_space<smem>>
    %c9 = arith.constant 9 : index
    %254 = memref.load %arg1[%c9] : memref<64xf32, #tpu.memory_space<smem>>
    %255 = vector.broadcast %254 : f32 to vector<8x1xf32>
    %256 = arith.mulf %255, %1 : vector<8x1xf32>
    %257 = vector.broadcast %253 : f32 to vector<8x1xf32>
    %258 = arith.addf %257, %256 : vector<8x1xf32>
    %c19 = arith.constant 19 : index
    %259 = memref.load %arg1[%c19] : memref<64xf32, #tpu.memory_space<smem>>
    %260 = vector.broadcast %259 : f32 to vector<8x1xf32>
    %261 = arith.mulf %260, %3 : vector<8x1xf32>
    %262 = arith.addf %258, %261 : vector<8x1xf32>
    %263 = arith.negf %262 : vector<8x1xf32>
    %264 = math.exp %263 : vector<8x1xf32>
    %cst_14 = arith.constant 1.000000e+00 : f32
    %265 = vector.broadcast %cst_14 : f32 to vector<8x1xf32>
    %266 = arith.addf %265, %264 : vector<8x1xf32>
    %267 = arith.divf %265, %266 : vector<8x1xf32>
    %c57 = arith.constant 57 : index
    %268 = memref.load %arg1[%c57] : memref<64xf32, #tpu.memory_space<smem>>
    %269 = vector.broadcast %268 : f32 to vector<8x1xf32>
    %270 = arith.mulf %269, %267 : vector<8x1xf32>
    %271 = arith.addf %244, %270 : vector<8x1xf32>
    %c58 = arith.constant 58 : index
    %272 = memref.load %arg1[%c58] : memref<64xf32, #tpu.memory_space<smem>>
    %273 = vector.broadcast %272 : f32 to vector<8x1xf32>
    %274 = arith.mulf %273, %267 : vector<8x1xf32>
    %275 = arith.addf %248, %274 : vector<8x1xf32>
    %c59 = arith.constant 59 : index
    %276 = memref.load %arg1[%c59] : memref<64xf32, #tpu.memory_space<smem>>
    %277 = vector.broadcast %276 : f32 to vector<8x1xf32>
    %278 = arith.mulf %277, %267 : vector<8x1xf32>
    %279 = arith.addf %252, %278 : vector<8x1xf32>
    %c0_15 = arith.constant 0 : index
    %c0_16 = arith.constant 0 : index
    %c0_17 = arith.constant 0 : index
    %280 = vector.load %arg3[%c0_15, %c0_16, %c0_17] : memref<3x8x1xf32, #tpu.memory_space<vmem>>, vector<1x8x1xf32>
    %281 = vector.shape_cast %280 : vector<1x8x1xf32> to vector<8x1xf32>
    %282 = vector.shape_cast %271 : vector<8x1xf32> to vector<1x8x1xf32>
    tpu.vector_store %arg3[%c0_15, %c0_16, %c0_17], %282 {strides = array<i32>} : memref<3x8x1xf32, #tpu.memory_space<vmem>>, vector<1x8x1xf32>,
    %c1_18 = arith.constant 1 : index
    %c0_19 = arith.constant 0 : index
    %c0_20 = arith.constant 0 : index
    %283 = vector.load %arg3[%c1_18, %c0_19, %c0_20] : memref<3x8x1xf32, #tpu.memory_space<vmem>>, vector<1x8x1xf32>
    %284 = vector.shape_cast %283 : vector<1x8x1xf32> to vector<8x1xf32>
    %285 = vector.shape_cast %275 : vector<8x1xf32> to vector<1x8x1xf32>
    tpu.vector_store %arg3[%c1_18, %c0_19, %c0_20], %285 {strides = array<i32>} : memref<3x8x1xf32, #tpu.memory_space<vmem>>, vector<1x8x1xf32>,
    %c2_21 = arith.constant 2 : index
    %c0_22 = arith.constant 0 : index
    %c0_23 = arith.constant 0 : index
    %286 = vector.load %arg3[%c2_21, %c0_22, %c0_23] : memref<3x8x1xf32, #tpu.memory_space<vmem>>, vector<1x8x1xf32>
    %287 = vector.shape_cast %286 : vector<1x8x1xf32> to vector<8x1xf32>
    %288 = vector.shape_cast %279 : vector<8x1xf32> to vector<1x8x1xf32>
    tpu.vector_store %arg3[%c2_21, %c0_22, %c0_23], %288 {strides = array<i32>} : memref<3x8x1xf32, #tpu.memory_space<vmem>>, vector<1x8x1xf32>,
    return
  }
  func.func @transform_0(%arg0: i32) -> i32 {
    %c0_i32 = arith.constant 0 : i32
    %c0_i32_0 = arith.constant 0 : i32
    return %c0_i32 : i32
  }
  func.func @transform_1(%arg0: i32) -> (i32, i32, i32) {
    %c0_i32 = arith.constant 0 : i32
    %c0_i32_0 = arith.constant 0 : i32
    %c0_i32_1 = arith.constant 0 : i32
    return %c0_i32, %c0_i32_0, %arg0 : i32, i32, i32
  }
  func.func @transform_2(%arg0: i32) -> (i32, i32, i32) {
    %c0_i32 = arith.constant 0 : i32
    %c0_i32_0 = arith.constant 0 : i32
    %c0_i32_1 = arith.constant 0 : i32
    return %c0_i32, %c0_i32_0, %arg0 : i32, i32, i32
  }
}

</mosaic_0001>

<llo_original>
// kernel: net_forward_packed.1
$region0: #{net_forward_packed.1}
  #allocation0 [shape = 'u32[]', space=smem, size = 0x4, offset = 0x4, fixed_abs, tag = 'smem constant byte address 0x4 - core index']
  #allocation1 [shape = 'u32[144,128]{1,0:T(1,128)}', space=vmem, size = 0x12000, scoped, tag = 'internal scratch']
  %s0 = inlined_call_operand.vmem [shape: f32[64], index: 0, kind: input, shape index: {}]
  %s1 = inlined_call_operand.vmem [shape: f32[2,8,1], index: 1, kind: input, shape index: {}]
  %s2 = inlined_call_operand.vmem [shape: f32[3,8,1], index: 2, kind: output, shape index: {}]
  %s3 = sld [smem:[#allocation0]]
  $region22: #{net_forward_packed.1} parent=0
    _
  %s5 = ssub.s32 1, %s3
  %s6 = scalar_select 0, %s5, %s3
  $region1: #{net_forward_packed.1} parent=0
    #allocation2 [shape = 'u8[512]{0}', space=smem, size = 0x200, scoped, tag = 'input window, operand 0, single buffered']
    #allocation3 [shape = 's32[1]{0}', space=sflag, size = 0x4, scoped, tag = 'scoped memory for net_forward_packed.1']
    %7 = vsyncpa [#allocation3], 0
    // Predicated region
    $region2: #{net_forward_packed.1} parent=1 // pred_check
      _
    $region3: #{net_forward_packed.1} parent=1 // pred_check_branch
      %9 = sbr.rel (0) target = $region5
    $region4: #{net_forward_packed.1} parent=1 // pred_region
      %s11 = ssub.s32 16, 16
      %12 = vsyncadd [#allocation3], %s11
      %s14 = sshll.u32 %s0, 4
      %s15 = int_to_ptr.vmem [resolvable:$true] %s14
      %17 = dma.vmem_to_smem %s15, 16, [#allocation2], [#allocation3]
    $region5: #{net_forward_packed.1} parent=1 // pred_fallthru
      _
    // Predicated region
    $region6: #{net_forward_packed.1} parent=1 // pred_check
      _
    $region7: #{net_forward_packed.1} parent=1 // pred_check_branch
      %19 = sbr.rel (0) target = $region9
    $region8: #{net_forward_packed.1} parent=1 // pred_region
      _
    $region9: #{net_forward_packed.1} parent=1 // pred_fallthru
      _
    // Predicated region
    $region10: #{net_forward_packed.1} parent=1 // pred_check
      _
    $region11: #{net_forward_packed.1} parent=1 // pred_check_branch
      %21 = sbr.rel (0) target = $region13
    $region12: #{net_forward_packed.1} parent=1 // pred_region
      %22 = dma.done [#allocation3], 16
    $region13: #{net_forward_packed.1} parent=1 // pred_fallthru
      _
    %23 = sfence
    %v24 = vld [vmem:[%s1] sm:$0xff]
    %s25 = scalar_lea.vmem %s1, 8
    %v26 = vld [vmem:[%s25] sm:$0xff]
    %s27 = sld [smem:[#allocation2 + $0x3c]]
    %v28 = vstv %s27
    %s29 = sld [smem:[#allocation2 + $0x3d]]
    %v30 = vstv %s29
    %s31 = sld [smem:[#allocation2 + $0x3e]]
    %v32 = vstv %s31
    %s33 = sld [smem:[#allocation2 + $0x14]]
    %s34 = sld [smem:[#allocation2]]
    %v35 = vstv %s34
    %v36 = vmul.f32 %v35, %v24
    %v37 = vstv %s33
    %v38 = vadd.f32 %v37, %v36
    %s39 = sld [smem:[#allocation2 + $0xa]]
    %v40 = vstv %s39
    %v41 = vmul.f32 %v40, %v26
    %v42 = vadd.f32 %v38, %v41
    %v43 = vxor.u32 %v42, 2147483648
    %v44 = vmul.f32 %v43, 1.442695
    %v45 = vpow.pop %v44
    %v46 = vadd.f32 %v45, 1.0
    %v47 = vrcp.pop %v46
    %v48 = vmul.f32 1.0, %v47
    %s49 = sld [smem:[#allocation2 + $0x1e]]
    %v50 = vstv %s49
    %v51 = vmul.f32 %v50, %v48
    %v52 = vadd.f32 %v28, %v51
    %s53 = sld [smem:[#allocation2 + $0x1f]]
    %v54 = vstv %s53
    %v55 = vmul.f32 %v54, %v48
    %v56 = vadd.f32 %v30, %v55
    %s57 = sld [smem:[#allocation2 + $0x20]]
    %v58 = vstv %s57
    %v59 = vmul.f32 %v58, %v48
    %v60 = vadd.f32 %v32, %v59
    %s61 = sld [smem:[#allocation2 + $0x15]]
    %s62 = sld [smem:[#allocation2 + $0x1]]
    %v63 = vstv %s62
    %v64 = vmul.f32 %v63, %v24
    %v65 = vstv %s61
    %v66 = vadd.f32 %v65, %v64
    %s67 = sld [smem:[#allocation2 + $0xb]]
    %v68 = vstv %s67
    %v69 = vmul.f32 %v68, %v26
    %v70 = vadd.f32 %v66, %v69
    %v71 = vxor.u32 %v70, 2147483648
    %v72 = vmul.f32 %v71, 1.442695
    %v73 = vpow.pop %v72
    %v74 = vadd.f32 %v73, 1.0
    %v75 = vrcp.pop %v74
    %v76 = vmul.f32 1.0, %v75
    %s77 = sld [smem:[#allocation2 + $0x21]]
    %v78 = vstv %s77
    %v79 = vmul.f32 %v78, %v76
    %v80 = vadd.f32 %v52, %v79
    %s81 = sld [smem:[#allocation2 + $0x22]]
    %v82 = vstv %s81
    %v83 = vmul.f32 %v82, %v76
    %v84 = vadd.f32 %v56, %v83
    %s85 = sld [smem:[#allocation2 + $0x23]]
    %v86 = vstv %s85
    %v87 = vmul.f32 %v86, %v76
    %v88 = vadd.f32 %v60, %v87
    %s89 = sld [smem:[#allocation2 + $0x16]]
    %s90 = sld [smem:[#allocation2 + $0x2]]
    %v91 = vstv %s90
    %v92 = vmul.f32 %v91, %v24
    %v93 = vstv %s89
    %v94 = vadd.f32 %v93, %v92
    %s95 = sld [smem:[#allocation2 + $0xc]]
    %v96 = vstv %s95
    %v97 = vmul.f32 %v96, %v26
    %v98 = vadd.f32 %v94, %v97
    %v99 = vxor.u32 %v98, 2147483648
    %v100 = vmul.f32 %v99, 1.442695
    %v101 = vpow.pop %v100
    %v102 = vadd.f32 %v101, 1.0
    %v103 = vrcp.pop %v102
    %v104 = vmul.f32 1.0, %v103
    %s105 = sld [smem:[#allocation2 + $0x24]]
    %v106 = vstv %s105
    %v107 = vmul.f32 %v106, %v104
    %v108 = vadd.f32 %v80, %v107
    %s109 = sld [smem:[#allocation2 + $0x25]]
    %v110 = vstv %s109
    %v111 = vmul.f32 %v110, %v104
    %v112 = vadd.f32 %v84, %v111
    %s113 = sld [smem:[#allocation2 + $0x26]]
    %v114 = vstv %s113
    %v115 = vmul.f32 %v114, %v104
    %v116 = vadd.f32 %v88, %v115
    %s117 = sld [smem:[#allocation2 + $0x17]]
    %s118 = sld [smem:[#allocation2 + $0x3]]
    %v119 = vstv %s118
    %v120 = vmul.f32 %v119, %v24
    %v121 = vstv %s117
    %v122 = vadd.f32 %v121, %v120
    %s123 = sld [smem:[#allocation2 + $0xd]]
    %v124 = vstv %s123
    %v125 = vmul.f32 %v124, %v26
    %v126 = vadd.f32 %v122, %v125
    %v127 = vxor.u32 %v126, 2147483648
    %v128 = vmul.f32 %v127, 1.442695
    %v129 = vpow.pop %v128
    %v130 = vadd.f32 %v129, 1.0
    %v131 = vrcp.pop %v130
    %v132 = vmul.f32 1.0, %v131
    %s133 = sld [smem:[#allocation2 + $0x27]]
    %v134 = vstv %s133
    %v135 = vmul.f32 %v134, %v132
    %v136 = vadd.f32 %v108, %v135
    %s137 = sld [smem:[#allocation2 + $0x28]]
    %v138 = vstv %s137
    %v139 = vmul.f32 %v138, %v132
    %v140 = vadd.f32 %v112, %v139
    %s141 = sld [smem:[#allocation2 + $0x29]]
    %v142 = vstv %s141
    %v143 = vmul.f32 %v142, %v132
    %v144 = vadd.f32 %v116, %v143
    %s145 = sld [smem:[#allocation2 + $0x18]]
    %s146 = sld [smem:[#allocation2 + $0x4]]
    %v147 = vstv %s146
    %v148 = vmul.f32 %v147, %v24
    %v149 = vstv %s145
    %v150 = vadd.f32 %v149, %v148
    %s151 = sld [smem:[#allocation2 + $0xe]]
    %v152 = vstv %s151
    %v153 = vmul.f32 %v152, %v26
    %v154 = vadd.f32 %v150, %v153
    %v155 = vxor.u32 %v154, 2147483648
    %v156 = vmul.f32 %v155, 1.442695
    %v157 = vpow.pop %v156
    %v158 = vadd.f32 %v157, 1.0
    %v159 = vrcp.pop %v158
    %v160 = vmul.f32 1.0, %v159
    %s161 = sld [smem:[#allocation2 + $0x2a]]
    %v162 = vstv %s161
    %v163 = vmul.f32 %v162, %v160
    %v164 = vadd.f32 %v136, %v163
    %s165 = sld [smem:[#allocation2 + $0x2b]]
    %v166 = vstv %s165
    %v167 = vmul.f32 %v166, %v160
    %v168 = vadd.f32 %v140, %v167
    %s169 = sld [smem:[#allocation2 + $0x2c]]
    %v170 = vstv %s169
    %v171 = vmul.f32 %v170, %v160
    %v172 = vadd.f32 %v144, %v171
    %s173 = sld [smem:[#allocation2 + $0x19]]
    %s174 = sld [smem:[#allocation2 + $0x5]]
    %v175 = vstv %s174
    %v176 = vmul.f32 %v175, %v24
    %v177 = vstv %s173
    %v178 = vadd.f32 %v177, %v176
    %s179 = sld [smem:[#allocation2 + $0xf]]
    %v180 = vstv %s179
    %v181 = vmul.f32 %v180, %v26
    %v182 = vadd.f32 %v178, %v181
    %v183 = vxor.u32 %v182, 2147483648
    %v184 = vmul.f32 %v183, 1.442695
    %v185 = vpow.pop %v184
    %v186 = vadd.f32 %v185, 1.0
    %v187 = vrcp.pop %v186
    %v188 = vmul.f32 1.0, %v187
    %s189 = sld [smem:[#allocation2 + $0x2d]]
    %v190 = vstv %s189
    %v191 = vmul.f32 %v190, %v188
    %v192 = vadd.f32 %v164, %v191
    %s193 = sld [smem:[#allocation2 + $0x2e]]
    %v194 = vstv %s193
    %v195 = vmul.f32 %v194, %v188
    %v196 = vadd.f32 %v168, %v195
    %s197 = sld [smem:[#allocation2 + $0x2f]]
    %v198 = vstv %s197
    %v199 = vmul.f32 %v198, %v188
    %v200 = vadd.f32 %v172, %v199
    %s201 = sld [smem:[#allocation2 + $0x1a]]
    %s202 = sld [smem:[#allocation2 + $0x6]]
    %v203 = vstv %s202
    %v204 = vmul.f32 %v203, %v24
    %v205 = vstv %s201
    %v206 = vadd.f32 %v205, %v204
    %s207 = sld [smem:[#allocation2 + $0x10]]
    %v208 = vstv %s207
    %v209 = vmul.f32 %v208, %v26
    %v210 = vadd.f32 %v206, %v209
    %v211 = vxor.u32 %v210, 2147483648
    %v212 = vmul.f32 %v211, 1.442695
    %v213 = vpow.pop %v212
    %v214 = vadd.f32 %v213, 1.0
    %v215 = vrcp.pop %v214
    %v216 = vmul.f32 1.0, %v215
    %s217 = sld [smem:[#allocation2 + $0x30]]
    %v218 = vstv %s217
    %v219 = vmul.f32 %v218, %v216
    %v220 = vadd.f32 %v192, %v219
    %s221 = sld [smem:[#allocation2 + $0x31]]
    %v222 = vstv %s221
    %v223 = vmul.f32 %v222, %v216
    %v224 = vadd.f32 %v196, %v223
    %s225 = sld [smem:[#allocation2 + $0x32]]
    %v226 = vstv %s225
    %v227 = vmul.f32 %v226, %v216
    %v228 = vadd.f32 %v200, %v227
    %s229 = sld [smem:[#allocation2 + $0x1b]]
    %s230 = sld [smem:[#allocation2 + $0x7]]
    %v231 = vstv %s230
    %v232 = vmul.f32 %v231, %v24
    %v233 = vstv %s229
    %v234 = vadd.f32 %v233, %v232
    %s235 = sld [smem:[#allocation2 + $0x11]]
    %v236 = vstv %s235
    %v237 = vmul.f32 %v236, %v26
    %v238 = vadd.f32 %v234, %v237
    %v239 = vxor.u32 %v238, 2147483648
    %v240 = vmul.f32 %v239, 1.442695
    %v241 = vpow.pop %v240
    %v242 = vadd.f32 %v241, 1.0
    %v243 = vrcp.pop %v242
    %v244 = vmul.f32 1.0, %v243
    %s245 = sld [smem:[#allocation2 + $0x33]]
    %v246 = vstv %s245
    %v247 = vmul.f32 %v246, %v244
    %v248 = vadd.f32 %v220, %v247
    %s249 = sld [smem:[#allocation2 + $0x34]]
    %v250 = vstv %s249
    %v251 = vmul.f32 %v250, %v244
    %v252 = vadd.f32 %v224, %v251
    %s253 = sld [smem:[#allocation2 + $0x35]]
    %v254 = vstv %s253
    %v255 = vmul.f32 %v254, %v244
    %v256 = vadd.f32 %v228, %v255
    %s257 = sld [smem:[#allocation2 + $0x1c]]
    %s258 = sld [smem:[#allocation2 + $0x8]]
    %v259 = vstv %s258
    %v260 = vmul.f32 %v259, %v24
    %v261 = vstv %s257
    %v262 = vadd.f32 %v261, %v260
    %s263 = sld [smem:[#allocation2 + $0x12]]
    %v264 = vstv %s263
    %v265 = vmul.f32 %v264, %v26
    %v266 = vadd.f32 %v262, %v265
    %v267 = vxor.u32 %v266, 2147483648
    %v268 = vmul.f32 %v267, 1.442695
    %v269 = vpow.pop %v268
    %v270 = vadd.f32 %v269, 1.0
    %v271 = vrcp.pop %v270
    %v272 = vmul.f32 1.0, %v271
    %s273 = sld [smem:[#allocation2 + $0x36]]
    %v274 = vstv %s273
    %v275 = vmul.f32 %v274, %v272
    %v276 = vadd.f32 %v248, %v275
    %s277 = sld [smem:[#allocation2 + $0x37]]
    %v278 = vstv %s277
    %v279 = vmul.f32 %v278, %v272
    %v280 = vadd.f32 %v252, %v279
    %s281 = sld [smem:[#allocation2 + $0x38]]
    %v282 = vstv %s281
    %v283 = vmul.f32 %v282, %v272
    %v284 = vadd.f32 %v256, %v283
    %s285 = sld [smem:[#allocation2 + $0x1d]]
    %s286 = sld [smem:[#allocation2 + $0x9]]
    %v287 = vstv %s286
    %v288 = vmul.f32 %v287, %v24
    %v289 = vstv %s285
    %v290 = vadd.f32 %v289, %v288
    %s291 = sld [smem:[#allocation2 + $0x13]]
    %v292 = vstv %s291
    %v293 = vmul.f32 %v292, %v26
    %v294 = vadd.f32 %v290, %v293
    %v295 = vxor.u32 %v294, 2147483648
    %v296 = vmul.f32 %v295, 1.442695
    %v297 = vpow.pop %v296
    %v298 = vadd.f32 %v297, 1.0
    %v299 = vrcp.pop %v298
    %v300 = vmul.f32 1.0, %v299
    %s301 = sld [smem:[#allocation2 + $0x39]]
    %v302 = vstv %s301
    %v303 = vmul.f32 %v302, %v300
    %v304 = vadd.f32 %v276, %v303
    %s305 = sld [smem:[#allocation2 + $0x3a]]
    %v306 = vstv %s305
    %v307 = vmul.f32 %v306, %v300
    %v308 = vadd.f32 %v280, %v307
    %s309 = sld [smem:[#allocation2 + $0x3b]]
    %v310 = vstv %s309
    %v311 = vmul.f32 %v310, %v300
    %v312 = vadd.f32 %v284, %v311
    %vm313 = vcmask 7168
    %314 = vst.msk [vmem:[%s2] sm:$0xff] %vm313, %v304
    %s315 = scalar_lea.vmem %s2, 8
    %316 = vst.msk [vmem:[%s315] sm:$0xff] %vm313, %v308
    %s317 = scalar_lea.vmem %s2, 16
    %318 = vst.msk [vmem:[%s317] sm:$0xff] %vm313, %v312
    // Predicated region
    $region14: #{net_forward_packed.1} parent=1 // pred_check
      _
    $region15: #{net_forward_packed.1} parent=1 // pred_check_branch
      %320 = sbr.rel (0) target = $region17
    $region16: #{net_forward_packed.1} parent=1 // pred_region
      _
    $region17: #{net_forward_packed.1} parent=1 // pred_fallthru
      _
    // Predicated region
    $region18: #{net_forward_packed.1} parent=1 // pred_check
      _
    $region19: #{net_forward_packed.1} parent=1 // pred_check_branch
      %322 = sbr.rel (0) target = $region21
    $region20: #{net_forward_packed.1} parent=1 // pred_region
      _
    $region21: #{net_forward_packed.1} parent=1 // pred_fallthru
      _
    %323 = vsyncpa [#allocation3], 1

</llo_original>
